<compile_context>
chip_gen: v7x
topology: tpu7x:2x2x1
jax: 0.10.0
libtpu: 0.0.40
codegen_flags: <defaults>
</compile_context>

<pallas_src>
import jax
import jax.numpy as jnp
from jax.experimental import pallas as pl
from jax.experimental.pallas import tpu as pltpu

KL_WEIGHT = 1e-5
UNCERTAINTY_WEIGHT = 0.1
EPS = 1e-8

_LANES = 128
# Below this element count (or for non-128-multiple counts) we skip Pallas:
# launch overhead dominates.  Kept small so the demo still exercises kernels;
# production could raise it.
_MIN_PALLAS_ELEMS = 1024


# --------------------------------------------------------------------------
# Hardware-aware sizing
# --------------------------------------------------------------------------
_VMEM_CAP_CACHE = None


def _vmem_capacity_bytes():
    """Per-TensorCore VMEM capacity (generation-aware; conservative fallback)."""
    global _VMEM_CAP_CACHE
    if _VMEM_CAP_CACHE is None:
        try:
            _VMEM_CAP_CACHE = int(pltpu.get_tpu_info().vmem_capacity_bytes)
        except Exception:
            _VMEM_CAP_CACHE = 64 << 20            # v7x-safe default
    return _VMEM_CAP_CACHE


def _target_block_bytes():
    # ~8 MiB / input block on 128 MiB chips (v5e/v6e), ~4 MiB on 64 MiB chips
    # (v7x): big enough to amortize per-grid-step overhead, small enough that
    # the double-buffered footprint stays inside scoped VMEM.
    return (8 << 20) if _vmem_capacity_bytes() >= (128 << 20) else (4 << 20)


def _vmem_limit(n_streams, block_bytes):
    """Explicit scoped-VMEM budget, capped below the chip's real capacity."""
    need = 2 * n_streams * block_bytes + (8 << 20)   # dbl-buffered inputs + headroom
    cap = max(_vmem_capacity_bytes() - (16 << 20), 32 << 20)
    return int(min(max(need, 32 << 20), cap))


# --------------------------------------------------------------------------
# Layout helpers
# --------------------------------------------------------------------------
def _block_rows(rows, max_itemsize, min_itemsize, target_bytes, min_blocks=2):
    """Rows per (tr, 128) block:
       * aligned to the packed sublane height of the narrowest dtype
         (8 rows f32, 16 bf16, 32 int8/fp8) so loads stay unmasked,
       * sized so one input block is ~target_bytes (one contiguous HBM DMA),
       * shrunk if needed so the grid has >= min_blocks steps, keeping the
         "parallel" grid axis useful on v7x's two TensorCores."""
    align = 8 * max(1, 4 // max(1, min_itemsize))
    if rows % align != 0 or rows <= align:
        return rows                                  # tiny/irregular: one full block
    cap = max(align, (target_bytes // (_LANES * max_itemsize)) // align * align)
    cap = min(rows, cap)
    best_single = None
    tr = cap
    while tr >= align:
        if rows % tr == 0:
            if best_single is None:
                best_single = tr
            if rows // tr >= min_blocks:
                return tr
        tr -= align
    return best_single if best_single is not None else rows


def _stream_layout(arrays):
    """Flatten N same-sized tensors to contiguous (rows, 128) slabs and pick a
    shared row tile.  Returns (flats, nb, tile_spec, part_spec, part_shape,
    block_bytes)."""
    n = arrays[0].size
    rows = n // _LANES
    flats = [a.reshape(rows, _LANES) for a in arrays]
    max_item = max(a.dtype.itemsize for a in flats)
    min_item = min(a.dtype.itemsize for a in flats)
    tr = _block_rows(rows, max_item, min_item, _target_block_bytes())
    nb = rows // tr
    block_bytes = tr * _LANES * max_item
    tile = pl.BlockSpec((tr, _LANES), lambda i: (i, 0))
    # Per-block partial sums: lane-dense (1, 128); middle size-1 dim keeps the
    # block's last-two dims equal to the full array dims (layout-clean store).
    part = pl.BlockSpec((1, 1, _LANES), lambda i: (i, 0, 0))
    part_shape = jax.ShapeDtypeStruct((nb, 1, _LANES), jnp.float32)
    return flats, nb, tile, part, part_shape, block_bytes


# --------------------------------------------------------------------------
# Kernel 1: per-block lane-dense partial sums (pass 1 of the loss).
#   sq = sum((pred-true)^2), ab = sum(|pred-true|), us = sum(uncertainty)
# --------------------------------------------------------------------------
def _sums_kernel(pred_ref, true_ref, unc_ref, sq_ref, ab_ref, us_ref):
    p = pred_ref[...].astype(jnp.float32)
    t = true_ref[...].astype(jnp.float32)
    u = unc_ref[...].astype(jnp.float32)
    err = p - t
    sq_ref[0] = jnp.sum(err * err, axis=0, keepdims=True)
    ab_ref[0] = jnp.sum(jnp.abs(err), axis=0, keepdims=True)
    us_ref[0] = jnp.sum(u, axis=0, keepdims=True)


# --------------------------------------------------------------------------
# Kernel 2: uncertainty-regularization mismatch partial sums (pass 2).
#   mismatch = | |pred-true| * inv_e - uncertainty * inv_u |
# inv_e / inv_u (reciprocals of the global means + eps) arrive via SMEM.
# --------------------------------------------------------------------------
def _mismatch_kernel(scale_ref, pred_ref, true_ref, unc_ref, out_ref):
    inv_e = scale_ref[0]
    inv_u = scale_ref[1]
    p = pred_ref[...].astype(jnp.float32)
    t = true_ref[...].astype(jnp.float32)
    u = unc_ref[...].astype(jnp.float32)
    mism = jnp.abs(jnp.abs(p - t) * inv_e - u * inv_u)
    out_ref[0] = jnp.sum(mism, axis=0, keepdims=True)
    # TODO(synk): for f32 inputs, pass 1 could emit |pred-true| in bf16 and this
    # pass could read (abs_err, uncertainty) instead (-17% HBM traffic); skipped
    # to keep bit-accuracy against the f32 reference.


# --------------------------------------------------------------------------
# Kernel 3: KL( N(mu, softplus(rho)^2) || N(0,1) ) partial sums, tiled.
# --------------------------------------------------------------------------
def _kl_kernel(mu_ref, rho_ref, out_ref):
    mu = mu_ref[...].astype(jnp.float32)
    rho = rho_ref[...].astype(jnp.float32)
    # numerically stable softplus; log(sigma) uses its asymptote for very
    # negative rho so it never hits log(0) = -inf.
    sp = jnp.maximum(rho, 0.0) + jnp.log1p(jnp.exp(-jnp.abs(rho)))
    log_sigma = jnp.where(rho < -20.0, rho, jnp.log(sp))
    kl = 0.5 * (sp * sp + mu * mu) - log_sigma - 0.5
    out_ref[0] = jnp.sum(kl, axis=0, keepdims=True)
    # TODO(synk): on v6e/v7x this pass is EUP-bound (3 transcendentals / elem vs
    # only 8 B/elem of HBM); a bf16 EUP path or a polynomial log1p would ~halve
    # it, skipped here to keep f32 accuracy with the reference.


# --------------------------------------------------------------------------
# Wrapper
# --------------------------------------------------------------------------
def bayesian_loss(pred, true, uncertainty, mu, rho,
                  kl_weight=KL_WEIGHT, uncertainty_weight=UNCERTAINTY_WEIGHT):
    n_elem = pred.size
    use_pallas_main = (n_elem % _LANES == 0) and (n_elem >= _MIN_PALLAS_ELEMS)

    # ---- pass 1: global sums (per-block lane-dense partials) ----------------
    if use_pallas_main:
        streams, nb, tile, part, part_shape, block_bytes = _stream_layout(
            [pred, true, uncertainty])
        sq_p, ab_p, us_p = pl.pallas_call(
            _sums_kernel,
            out_shape=(part_shape, part_shape, part_shape),
            grid_spec=pltpu.PrefetchScalarGridSpec(
                num_scalar_prefetch=0,
                grid=(nb,),
                in_specs=[tile, tile, tile],
                out_specs=[part, part, part],
            ),
            compiler_params=pltpu.CompilerParams(
                dimension_semantics=("parallel",),
                vmem_limit_bytes=_vmem_limit(3, block_bytes)),
        )(*streams)
        sq, ab, us = jnp.sum(sq_p), jnp.sum(ab_p), jnp.sum(us_p)
    else:
        # small / irregular shapes: launch overhead dominates -> plain jnp
        err = pred.astype(jnp.float32) - true.astype(jnp.float32)
        sq = jnp.sum(err * err)
        ab = jnp.sum(jnp.abs(err))
        us = jnp.sum(uncertainty.astype(jnp.float32))

    base_loss = sq / n_elem            # F.mse_loss(pred, true), mean reduction
    mean_err = ab / n_elem             # torch.mean(|pred - true|)
    mean_unc = us / n_elem             # torch.mean(uncertainty)

    # Hoist per-element divides into two scalar reciprocals.
    scale = jnp.stack([1.0 / (mean_err + EPS),
                       1.0 / (mean_unc + EPS)]).astype(jnp.float32)

    # ---- pass 2: uncertainty regularization ---------------------------------
    if use_pallas_main:
        mism_p = pl.pallas_call(
            _mismatch_kernel,
            out_shape=part_shape,
            grid_spec=pltpu.PrefetchScalarGridSpec(
                num_scalar_prefetch=0,
                grid=(nb,),
                in_specs=[pl.BlockSpec(memory_space=pltpu.SMEM),
                          tile, tile, tile],
                out_specs=part,
            ),
            compiler_params=pltpu.CompilerParams(
                dimension_semantics=("parallel",),
                vmem_limit_bytes=_vmem_limit(3, block_bytes)),
        )(scale, *streams)
        mism = jnp.sum(mism_p)
    else:
        p32 = pred.astype(jnp.float32)
        t32 = true.astype(jnp.float32)
        u32 = uncertainty.astype(jnp.float32)
        mism = jnp.sum(jnp.abs(jnp.abs(p32 - t32) * scale[0] - u32 * scale[1]))
    uncertainty_loss = mism / n_elem

    # ---- KL term from the (synthetic) Bayesian model's parameters -----------
    n_par = mu.size
    use_pallas_kl = (n_par % _LANES == 0) and (n_par >= _MIN_PALLAS_ELEMS)
    if use_pallas_kl:
        kstreams, knb, ktile, kpart, kpart_shape, kblock_bytes = _stream_layout(
            [mu, rho])
        kl_p = pl.pallas_call(
            _kl_kernel,
            out_shape=kpart_shape,
            grid_spec=pltpu.PrefetchScalarGridSpec(
                num_scalar_prefetch=0,
                grid=(knb,),
                in_specs=[ktile, ktile],
                out_specs=kpart,
            ),
            compiler_params=pltpu.CompilerParams(
                dimension_semantics=("parallel",),
                vmem_limit_bytes=_vmem_limit(2, kblock_bytes)),
        )(*kstreams)
        kl_loss = jnp.sum(kl_p)
    else:
        mu32 = mu.astype(jnp.float32)
        rho32 = rho.astype(jnp.float32)
        sp = jax.nn.softplus(rho32)
        kl_loss = jnp.sum(0.5 * (sp * sp + mu32 * mu32) - jnp.log(sp) - 0.5)

    total_loss = (base_loss
                  + kl_weight * kl_loss
                  + uncertainty_weight * uncertainty_loss)

    return {
        "total_loss": total_loss,
        "base_loss": base_loss,
        "kl_loss": kl_loss,
        "uncertainty_loss": uncertainty_loss,
        "kl_weight": kl_weight,
        "uncertainty_weight": uncertainty_weight,
    }


if __name__ == "__main__":
    key = jax.random.PRNGKey(0)
    k_pred, k_true, k_unc, k_mu, k_rho = jax.random.split(key, 5)

    # Small shapes consistent with the module's forward (NCHW prediction maps).
    B, C, H, W = 2, 4, 16, 16
    pred = jax.random.normal(k_pred, (B, C, H, W), dtype=jnp.float32)
    true = jax.random.normal(k_true, (B, C, H, W), dtype=jnp.float32)
    # uncertainty is positive (e.g. a predicted-variance head).
    uncertainty = jax.nn.softplus(
        jax.random.normal(k_unc, (B, C, H, W), dtype=jnp.float32))

    # Deterministic synthetic Bayesian-layer parameters (for the KL term).
    mu = 0.05 * jax.random.normal(k_mu, (8, 128), dtype=jnp.float32)
    rho = -3.0 + 0.1 * jax.random.normal(k_rho, (8, 128), dtype=jnp.float32)

    loss_fn = jax.jit(bayesian_loss)
    out = loss_fn(pred, true, uncertainty, mu, rho)
    jax.block_until_ready(out["total_loss"])
    jax.block_until_ready(out["base_loss"])
    jax.block_until_ready(out["uncertainty_loss"])
    jax.block_until_ready(out["kl_loss"])

    # Lightweight sanity check against a pure-JAX reference of the same math.
    err = jnp.abs(pred - true)
    ref_base = jnp.mean((pred - true) ** 2)
    ref_unc = jnp.mean(jnp.abs(err / (jnp.mean(err) + EPS)
                               - uncertainty / (jnp.mean(uncertainty) + EPS)))
    sigma = jax.nn.softplus(rho)
    ref_kl = jnp.sum(-jnp.log(sigma) + 0.5 * (sigma ** 2 + mu ** 2) - 0.5)
    ref_total = ref_base + KL_WEIGHT * ref_kl + UNCERTAINTY_WEIGHT * ref_unc
    assert jnp.allclose(out["base_loss"], ref_base, rtol=1e-5, atol=1e-5)
    assert jnp.allclose(out["uncertainty_loss"], ref_unc, rtol=1e-5, atol=1e-5)
    assert jnp.allclose(out["kl_loss"], ref_kl, rtol=1e-5, atol=1e-5)
    assert jnp.allclose(out["total_loss"], ref_total, rtol=1e-5, atol=1e-5)

    print("KERNEL_OK")
</pallas_src>

<mosaic_0001>
module attributes {stable_mosaic.version = 11 : i64} {
  func.func @_sums_kernel(%arg0: i32, %arg1: memref<8x128xf32, #tpu.memory_space<vmem>>, %arg2: memref<8x128xf32, #tpu.memory_space<vmem>>, %arg3: memref<8x128xf32, #tpu.memory_space<vmem>>, %arg4: memref<1x1x128xf32, #tpu.memory_space<vmem>>, %arg5: memref<1x1x128xf32, #tpu.memory_space<vmem>>, %arg6: memref<1x1x128xf32, #tpu.memory_space<vmem>>) attributes {dimension_semantics = [#tpu.dimension_semantics<parallel>], iteration_bounds = array<i64: 2>, scalar_prefetch = 0 : i64, scratch_operands = 0 : i64, tpu.core_type = #tpu.core_type<tc>, window_params = [{transform_indices = @transform_0, window_bounds = array<i64: 8, 128>}, {transform_indices = @transform_1, window_bounds = array<i64: 8, 128>}, {transform_indices = @transform_2, window_bounds = array<i64: 8, 128>}, {transform_indices = @transform_3, window_bounds = array<i64: 1, 1, 128>}, {transform_indices = @transform_4, window_bounds = array<i64: 1, 1, 128>}, {transform_indices = @transform_5, window_bounds = array<i64: 1, 1, 128>}]} {
    %c0 = arith.constant 0 : index
    %c0_0 = arith.constant 0 : index
    %0 = vector.load %arg1[%c0, %c0_0] : memref<8x128xf32, #tpu.memory_space<vmem>>, vector<8x128xf32>
    %c0_1 = arith.constant 0 : index
    %c0_2 = arith.constant 0 : index
    %1 = vector.load %arg2[%c0_1, %c0_2] : memref<8x128xf32, #tpu.memory_space<vmem>>, vector<8x128xf32>
    %c0_3 = arith.constant 0 : index
    %c0_4 = arith.constant 0 : index
    %2 = vector.load %arg3[%c0_3, %c0_4] : memref<8x128xf32, #tpu.memory_space<vmem>>, vector<8x128xf32>
    %3 = arith.subf %0, %1 : vector<8x128xf32>
    %4 = arith.mulf %3, %3 : vector<8x128xf32>
    %cst = arith.constant dense<0.000000e+00> : vector<128xf32>
    %5 = vector.multi_reduction <add>, %4, %cst [0] : vector<8x128xf32> to vector<128xf32>
    %6 = vector.shape_cast %5 : vector<128xf32> to vector<1x128xf32>
    %c0_5 = arith.constant 0 : index
    %c0_6 = arith.constant 0 : index
    %c0_7 = arith.constant 0 : index
    %7 = vector.load %arg4[%c0_5, %c0_6, %c0_7] : memref<1x1x128xf32, #tpu.memory_space<vmem>>, vector<1x1x128xf32>
    %8 = vector.shape_cast %7 : vector<1x1x128xf32> to vector<1x128xf32>
    %9 = vector.shape_cast %6 : vector<1x128xf32> to vector<1x1x128xf32>
    tpu.vector_store %arg4[%c0_5, %c0_6, %c0_7], %9 {strides = array<i32>} : memref<1x1x128xf32, #tpu.memory_space<vmem>>, vector<1x1x128xf32>,
    %10 = math.absf %3 : vector<8x128xf32>
    %cst_8 = arith.constant dense<0.000000e+00> : vector<128xf32>
    %11 = vector.multi_reduction <add>, %10, %cst_8 [0] : vector<8x128xf32> to vector<128xf32>
    %12 = vector.shape_cast %11 : vector<128xf32> to vector<1x128xf32>
    %c0_9 = arith.constant 0 : index
    %c0_10 = arith.constant 0 : index
    %c0_11 = arith.constant 0 : index
    %13 = vector.load %arg5[%c0_9, %c0_10, %c0_11] : memref<1x1x128xf32, #tpu.memory_space<vmem>>, vector<1x1x128xf32>
    %14 = vector.shape_cast %13 : vector<1x1x128xf32> to vector<1x128xf32>
    %15 = vector.shape_cast %12 : vector<1x128xf32> to vector<1x1x128xf32>
    tpu.vector_store %arg5[%c0_9, %c0_10, %c0_11], %15 {strides = array<i32>} : memref<1x1x128xf32, #tpu.memory_space<vmem>>, vector<1x1x128xf32>,
    %cst_12 = arith.constant dense<0.000000e+00> : vector<128xf32>
    %16 = vector.multi_reduction <add>, %2, %cst_12 [0] : vector<8x128xf32> to vector<128xf32>
    %17 = vector.shape_cast %16 : vector<128xf32> to vector<1x128xf32>
    %c0_13 = arith.constant 0 : index
    %c0_14 = arith.constant 0 : index
    %c0_15 = arith.constant 0 : index
    %18 = vector.load %arg6[%c0_13, %c0_14, %c0_15] : memref<1x1x128xf32, #tpu.memory_space<vmem>>, vector<1x1x128xf32>
    %19 = vector.shape_cast %18 : vector<1x1x128xf32> to vector<1x128xf32>
    %20 = vector.shape_cast %17 : vector<1x128xf32> to vector<1x1x128xf32>
    tpu.vector_store %arg6[%c0_13, %c0_14, %c0_15], %20 {strides = array<i32>} : memref<1x1x128xf32, #tpu.memory_space<vmem>>, vector<1x1x128xf32>,
    return
  }
  func.func @transform_0(%arg0: i32) -> (i32, i32) {
    %c0_i32 = arith.constant 0 : i32
    %c0_i32_0 = arith.constant 0 : i32
    return %arg0, %c0_i32 : i32, i32
  }
  func.func @transform_1(%arg0: i32) -> (i32, i32) {
    %c0_i32 = arith.constant 0 : i32
    %c0_i32_0 = arith.constant 0 : i32
    return %arg0, %c0_i32 : i32, i32
  }
  func.func @transform_2(%arg0: i32) -> (i32, i32) {
    %c0_i32 = arith.constant 0 : i32
    %c0_i32_0 = arith.constant 0 : i32
    return %arg0, %c0_i32 : i32, i32
  }
  func.func @transform_3(%arg0: i32) -> (i32, i32, i32) {
    %c0_i32 = arith.constant 0 : i32
    %c0_i32_0 = arith.constant 0 : i32
    %c0_i32_1 = arith.constant 0 : i32
    return %arg0, %c0_i32, %c0_i32_0 : i32, i32, i32
  }
  func.func @transform_4(%arg0: i32) -> (i32, i32, i32) {
    %c0_i32 = arith.constant 0 : i32
    %c0_i32_0 = arith.constant 0 : i32
    %c0_i32_1 = arith.constant 0 : i32
    return %arg0, %c0_i32, %c0_i32_0 : i32, i32, i32
  }
  func.func @transform_5(%arg0: i32) -> (i32, i32, i32) {
    %c0_i32 = arith.constant 0 : i32
    %c0_i32_0 = arith.constant 0 : i32
    %c0_i32_1 = arith.constant 0 : i32
    return %arg0, %c0_i32, %c0_i32_0 : i32, i32, i32
  }
}

module attributes {stable_mosaic.version = 11 : i64} {
  func.func @_kl_kernel(%arg0: i32, %arg1: memref<8x128xf32, #tpu.memory_space<vmem>>, %arg2: memref<8x128xf32, #tpu.memory_space<vmem>>, %arg3: memref<1x1x128xf32, #tpu.memory_space<vmem>>) attributes {dimension_semantics = [#tpu.dimension_semantics<parallel>], iteration_bounds = array<i64: 1>, scalar_prefetch = 0 : i64, scratch_operands = 0 : i64, tpu.core_type = #tpu.core_type<tc>, window_params = [{transform_indices = @transform_0, window_bounds = array<i64: 8, 128>}, {transform_indices = @transform_1, window_bounds = array<i64: 8, 128>}, {transform_indices = @transform_2, window_bounds = array<i64: 1, 1, 128>}]} {
    %c0 = arith.constant 0 : index
    %c0_0 = arith.constant 0 : index
    %0 = vector.load %arg1[%c0, %c0_0] : memref<8x128xf32, #tpu.memory_space<vmem>>, vector<8x128xf32>
    %c0_1 = arith.constant 0 : index
    %c0_2 = arith.constant 0 : index
    %1 = vector.load %arg2[%c0_1, %c0_2] : memref<8x128xf32, #tpu.memory_space<vmem>>, vector<8x128xf32>
    %cst = arith.constant 0.000000e+00 : f32
    %2 = vector.broadcast %cst : f32 to vector<8x128xf32>
    %3 = arith.maximumf %1, %2 : vector<8x128xf32>
    %4 = math.absf %1 : vector<8x128xf32>
    %cst_3 = arith.constant 0.000000e+00 : f32
    %5 = vector.broadcast %cst_3 : f32 to vector<8x128xf32>
    %6 = arith.subf %5, %4 : vector<8x128xf32>
    %7 = math.exp %6 : vector<8x128xf32>
    %8 = math.log1p %7 : vector<8x128xf32>
    %9 = arith.addf %3, %8 : vector<8x128xf32>
    %cst_4 = arith.constant -2.000000e+01 : f32
    %10 = vector.broadcast %cst_4 : f32 to vector<8x128xf32>
    %11 = arith.cmpf olt, %1, %10 : vector<8x128xf32>
    %12 = math.log %9 : vector<8x128xf32>
    %13 = arith.select %11, %1, %12 : vector<8x128xi1>, vector<8x128xf32>
    %14 = arith.mulf %9, %9 : vector<8x128xf32>
    %15 = arith.mulf %0, %0 : vector<8x128xf32>
    %16 = arith.addf %14, %15 : vector<8x128xf32>
    %cst_5 = arith.constant 5.000000e-01 : f32
    %17 = vector.broadcast %cst_5 : f32 to vector<8x128xf32>
    %18 = arith.mulf %17, %16 : vector<8x128xf32>
    %19 = arith.subf %18, %13 : vector<8x128xf32>
    %cst_6 = arith.constant 5.000000e-01 : f32
    %20 = vector.broadcast %cst_6 : f32 to vector<8x128xf32>
    %21 = arith.subf %19, %20 : vector<8x128xf32>
    %cst_7 = arith.constant dense<0.000000e+00> : vector<128xf32>
    %22 = vector.multi_reduction <add>, %21, %cst_7 [0] : vector<8x128xf32> to vector<128xf32>
    %23 = vector.shape_cast %22 : vector<128xf32> to vector<1x128xf32>
    %c0_8 = arith.constant 0 : index
    %c0_9 = arith.constant 0 : index
    %c0_10 = arith.constant 0 : index
    %24 = vector.load %arg3[%c0_8, %c0_9, %c0_10] : memref<1x1x128xf32, #tpu.memory_space<vmem>>, vector<1x1x128xf32>
    %25 = vector.shape_cast %24 : vector<1x1x128xf32> to vector<1x128xf32>
    %26 = vector.shape_cast %23 : vector<1x128xf32> to vector<1x1x128xf32>
    tpu.vector_store %arg3[%c0_8, %c0_9, %c0_10], %26 {strides = array<i32>} : memref<1x1x128xf32, #tpu.memory_space<vmem>>, vector<1x1x128xf32>,
    return
  }
  func.func @transform_0(%arg0: i32) -> (i32, i32) {
    %c0_i32 = arith.constant 0 : i32
    %c0_i32_0 = arith.constant 0 : i32
    return %arg0, %c0_i32 : i32, i32
  }
  func.func @transform_1(%arg0: i32) -> (i32, i32) {
    %c0_i32 = arith.constant 0 : i32
    %c0_i32_0 = arith.constant 0 : i32
    return %arg0, %c0_i32 : i32, i32
  }
  func.func @transform_2(%arg0: i32) -> (i32, i32, i32) {
    %c0_i32 = arith.constant 0 : i32
    %c0_i32_0 = arith.constant 0 : i32
    %c0_i32_1 = arith.constant 0 : i32
    return %arg0, %c0_i32, %c0_i32_0 : i32, i32, i32
  }
}

module attributes {stable_mosaic.version = 11 : i64} {
  func.func @_mismatch_kernel(%arg0: i32, %arg1: memref<2xf32, #tpu.memory_space<smem>>, %arg2: memref<8x128xf32, #tpu.memory_space<vmem>>, %arg3: memref<8x128xf32, #tpu.memory_space<vmem>>, %arg4: memref<8x128xf32, #tpu.memory_space<vmem>>, %arg5: memref<1x1x128xf32, #tpu.memory_space<vmem>>) attributes {dimension_semantics = [#tpu.dimension_semantics<parallel>], iteration_bounds = array<i64: 2>, scalar_prefetch = 0 : i64, scratch_operands = 0 : i64, tpu.core_type = #tpu.core_type<tc>, window_params = [{transform_indices = @transform_0, window_bounds = array<i64: 2>}, {transform_indices = @transform_1, window_bounds = array<i64: 8, 128>}, {transform_indices = @transform_2, window_bounds = array<i64: 8, 128>}, {transform_indices = @transform_3, window_bounds = array<i64: 8, 128>}, {transform_indices = @transform_4, window_bounds = array<i64: 1, 1, 128>}]} {
    %c0 = arith.constant 0 : index
    %0 = memref.load %arg1[%c0] : memref<2xf32, #tpu.memory_space<smem>>
    %c1 = arith.constant 1 : index
    %1 = memref.load %arg1[%c1] : memref<2xf32, #tpu.memory_space<smem>>
    %c0_0 = arith.constant 0 : index
    %c0_1 = arith.constant 0 : index
    %2 = vector.load %arg2[%c0_0, %c0_1] : memref<8x128xf32, #tpu.memory_space<vmem>>, vector<8x128xf32>
    %c0_2 = arith.constant 0 : index
    %c0_3 = arith.constant 0 : index
    %3 = vector.load %arg3[%c0_2, %c0_3] : memref<8x128xf32, #tpu.memory_space<vmem>>, vector<8x128xf32>
    %c0_4 = arith.constant 0 : index
    %c0_5 = arith.constant 0 : index
    %4 = vector.load %arg4[%c0_4, %c0_5] : memref<8x128xf32, #tpu.memory_space<vmem>>, vector<8x128xf32>
    %5 = arith.subf %2, %3 : vector<8x128xf32>
    %6 = math.absf %5 : vector<8x128xf32>
    %7 = vector.broadcast %0 : f32 to vector<8x128xf32>
    %8 = arith.mulf %6, %7 : vector<8x128xf32>
    %9 = vector.broadcast %1 : f32 to vector<8x128xf32>
    %10 = arith.mulf %4, %9 : vector<8x128xf32>
    %11 = arith.subf %8, %10 : vector<8x128xf32>
    %12 = math.absf %11 : vector<8x128xf32>
    %cst = arith.constant dense<0.000000e+00> : vector<128xf32>
    %13 = vector.multi_reduction <add>, %12, %cst [0] : vector<8x128xf32> to vector<128xf32>
    %14 = vector.shape_cast %13 : vector<128xf32> to vector<1x128xf32>
    %c0_6 = arith.constant 0 : index
    %c0_7 = arith.constant 0 : index
    %c0_8 = arith.constant 0 : index
    %15 = vector.load %arg5[%c0_6, %c0_7, %c0_8] : memref<1x1x128xf32, #tpu.memory_space<vmem>>, vector<1x1x128xf32>
    %16 = vector.shape_cast %15 : vector<1x1x128xf32> to vector<1x128xf32>
    %17 = vector.shape_cast %14 : vector<1x128xf32> to vector<1x1x128xf32>
    tpu.vector_store %arg5[%c0_6, %c0_7, %c0_8], %17 {strides = array<i32>} : memref<1x1x128xf32, #tpu.memory_space<vmem>>, vector<1x1x128xf32>,
    return
  }
  func.func @transform_0(%arg0: i32) -> i32 {
    %c0_i32 = arith.constant 0 : i32
    %c0_i32_0 = arith.constant 0 : i32
    return %c0_i32 : i32
  }
  func.func @transform_1(%arg0: i32) -> (i32, i32) {
    %c0_i32 = arith.constant 0 : i32
    %c0_i32_0 = arith.constant 0 : i32
    return %arg0, %c0_i32 : i32, i32
  }
  func.func @transform_2(%arg0: i32) -> (i32, i32) {
    %c0_i32 = arith.constant 0 : i32
    %c0_i32_0 = arith.constant 0 : i32
    return %arg0, %c0_i32 : i32, i32
  }
  func.func @transform_3(%arg0: i32) -> (i32, i32) {
    %c0_i32 = arith.constant 0 : i32
    %c0_i32_0 = arith.constant 0 : i32
    return %arg0, %c0_i32 : i32, i32
  }
  func.func @transform_4(%arg0: i32) -> (i32, i32, i32) {
    %c0_i32 = arith.constant 0 : i32
    %c0_i32_0 = arith.constant 0 : i32
    %c0_i32_1 = arith.constant 0 : i32
    return %arg0, %c0_i32, %c0_i32_0 : i32, i32, i32
  }
}

</mosaic_0001>

<llo_original>
// kernel: bayesian_loss.3
$region0: #{bayesian_loss.3}
  #allocation0 [shape = 'u32[]', space=smem, size = 0x4, offset = 0x4, fixed_abs, tag = 'smem constant byte address 0x4 - core index']
  #allocation1 [shape = 'u32[144,128]{1,0:T(1,128)}', space=vmem, size = 0x12000, scoped, tag = 'internal scratch']
  %s0 = inlined_call_operand.vmem [shape: f32[16,128], index: 0, kind: input, shape index: {}]
  %s1 = inlined_call_operand.vmem [shape: f32[16,128], index: 1, kind: input, shape index: {}]
  %s2 = inlined_call_operand.vmem [shape: f32[16,128], index: 2, kind: input, shape index: {}]
  %s3 = inlined_call_operand.vmem [shape: f32[2,1,128], index: 3, kind: output, shape index: {0}]
  %s4 = inlined_call_operand.vmem [shape: f32[2,1,128], index: 4, kind: output, shape index: {1}]
  %s5 = inlined_call_operand.vmem [shape: f32[2,1,128], index: 5, kind: output, shape index: {2}]
  %6 = xla_tuple %s3, %s4, %s5
  %s7 = sld [smem:[#allocation0]]
  $region61: #{bayesian_loss.3} parent=0
    _
  %s9 = ssub.s32 1, %s7
  %s10 = scalar_select 0, %s9, %s7
  loop: start=0, step=1, limit=4
  $region2: #{bayesian_loss.3} parent=0 // loop_pre_header
    _
  $region3: #{bayesian_loss.3} parent=0 // loop_header
    %s12 = sphi 0, %s16
    %p13 = scmp.ge.s32.totalorder %s12, 4
    %s22 = sphi 0, %s24
    %s25 = sphi 0, %s22
    %s26 = sphi 0, %s25
    %s42 = sphi 0, %s26
    %s48 = sphi 0, %s50
    %s51 = sphi 0, %s48
    %s52 = sphi 0, %s51
    %s68 = sphi 0, %s52
    %s74 = sphi 0, %s76
    %s77 = sphi 0, %s74
    %s78 = sphi 0, %s77
    %s94 = sphi 0, %s78
    %s100 = sphi 0, %s102
    %s103 = sphi 0, %s100
    %s104 = sphi 0, %s103
    %s120 = sphi 0, %s104
    %s126 = sphi 0, %s128
    %s129 = sphi 0, %s126
    %s130 = sphi 0, %s129
    %s146 = sphi 0, %s130
    %s152 = sphi 0, %s154
    %s155 = sphi 0, %s152
    %s156 = sphi 0, %s155
    %s172 = sphi 0, %s156
  $region4: #{bayesian_loss.3} parent=0 // loop_header_branch
    %15 = sbr.rel (%p13) target = $region8
  $region5: #{bayesian_loss.3} parent=0 // loop_body
    %s17 = ssub.s32 %s12, 1
    %s18 = ssub.s32 %s12, 2
    %s19 = sadd.s32 %s12, 1
    %s20 = ssub.s32 %s12, %s19
    %p21 = scmp.eq.s32.totalorder %s20, 0
    %s23 = sadd.s32 %s22, 1
    %s24 = scalar_select %p21, %s22, %s23
    %p27 = pneg %p21
    %p28 = scmp.eq.s32.totalorder %s12, 1
    %p29 = por %p27, %p28
    %p30 = scmp.ne.s32.totalorder %s22, %s25
    %p31 = scmp.eq.s32.totalorder %s12, 0
    %p32 = por %p30, %p31
    %p33 = scmp.ne.s32.totalorder %s22, %s25
    %p34 = scmp.eq.s32.totalorder %s17, 1
    %p35 = por %p33, %p34
    %p36 = scmp.ne.s32.totalorder %s25, %s26
    %p37 = scmp.eq.s32.totalorder %s17, 0
    %p38 = por %p36, %p37
    %p39 = scmp.ne.s32.totalorder %s25, %s26
    %p40 = scmp.eq.s32.totalorder %s18, 1
    %p41 = por %p39, %p40
    %p43 = scmp.ne.s32.totalorder %s26, %s42
    %p44 = scmp.eq.s32.totalorder %s18, 0
    %p45 = por %p43, %p44
    %s46 = ssub.s32 %s12, %s19
    %p47 = scmp.eq.s32.totalorder %s46, 0
    %s49 = sadd.s32 %s48, 1
    %s50 = scalar_select %p47, %s48, %s49
    %p53 = pneg %p47
    %p54 = scmp.eq.s32.totalorder %s12, 1
    %p55 = por %p53, %p54
    %p56 = scmp.ne.s32.totalorder %s48, %s51
    %p57 = scmp.eq.s32.totalorder %s12, 0
    %p58 = por %p56, %p57
    %p59 = scmp.ne.s32.totalorder %s48, %s51
    %p60 = scmp.eq.s32.totalorder %s17, 1
    %p61 = por %p59, %p60
    %p62 = scmp.ne.s32.totalorder %s51, %s52
    %p63 = scmp.eq.s32.totalorder %s17, 0
    %p64 = por %p62, %p63
    %p65 = scmp.ne.s32.totalorder %s51, %s52
    %p66 = scmp.eq.s32.totalorder %s18, 1
    %p67 = por %p65, %p66
    %p69 = scmp.ne.s32.totalorder %s52, %s68
    %p70 = scmp.eq.s32.totalorder %s18, 0
    %p71 = por %p69, %p70
    %s72 = ssub.s32 %s12, %s19
    %p73 = scmp.eq.s32.totalorder %s72, 0
    %s75 = sadd.s32 %s74, 1
    %s76 = scalar_select %p73, %s74, %s75
    %p79 = pneg %p73
    %p80 = scmp.eq.s32.totalorder %s12, 1
    %p81 = por %p79, %p80
    %p82 = scmp.ne.s32.totalorder %s74, %s77
    %p83 = scmp.eq.s32.totalorder %s12, 0
    %p84 = por %p82, %p83
    %p85 = scmp.ne.s32.totalorder %s74, %s77
    %p86 = scmp.eq.s32.totalorder %s17, 1
    %p87 = por %p85, %p86
    %p88 = scmp.ne.s32.totalorder %s77, %s78
    %p89 = scmp.eq.s32.totalorder %s17, 0
    %p90 = por %p88, %p89
    %p91 = scmp.ne.s32.totalorder %s77, %s78
    %p92 = scmp.eq.s32.totalorder %s18, 1
    %p93 = por %p91, %p92
    %p95 = scmp.ne.s32.totalorder %s78, %s94
    %p96 = scmp.eq.s32.totalorder %s18, 0
    %p97 = por %p95, %p96
    %s98 = ssub.s32 %s12, %s19
    %p99 = scmp.eq.s32.totalorder %s98, 0
    %s101 = sadd.s32 %s100, 1
    %s102 = scalar_select %p99, %s100, %s101
    %p105 = pneg %p99
    %p106 = scmp.eq.s32.totalorder %s12, 1
    %p107 = por %p105, %p106
    %p108 = scmp.ne.s32.totalorder %s100, %s103
    %p109 = scmp.eq.s32.totalorder %s12, 0
    %p110 = por %p108, %p109
    %p111 = scmp.ne.s32.totalorder %s100, %s103
    %p112 = scmp.eq.s32.totalorder %s17, 1
    %p113 = por %p111, %p112
    %p114 = scmp.ne.s32.totalorder %s103, %s104
    %p115 = scmp.eq.s32.totalorder %s17, 0
    %p116 = por %p114, %p115
    %p117 = scmp.ne.s32.totalorder %s103, %s104
    %p118 = scmp.eq.s32.totalorder %s18, 1
    %p119 = por %p117, %p118
    %p121 = scmp.ne.s32.totalorder %s104, %s120
    %p122 = scmp.eq.s32.totalorder %s18, 0
    %p123 = por %p121, %p122
    %s124 = ssub.s32 %s12, %s19
    %p125 = scmp.eq.s32.totalorder %s124, 0
    %s127 = sadd.s32 %s126, 1
    %s128 = scalar_select %p125, %s126, %s127
    %p131 = pneg %p125
    %p132 = scmp.eq.s32.totalorder %s12, 1
    %p133 = por %p131, %p132
    %p134 = scmp.ne.s32.totalorder %s126, %s129
    %p135 = scmp.eq.s32.totalorder %s12, 0
    %p136 = por %p134, %p135
    %p137 = scmp.ne.s32.totalorder %s126, %s129
    %p138 = scmp.eq.s32.totalorder %s17, 1
    %p139 = por %p137, %p138
    %p140 = scmp.ne.s32.totalorder %s129, %s130
    %p141 = scmp.eq.s32.totalorder %s17, 0
    %p142 = por %p140, %p141
    %p143 = scmp.ne.s32.totalorder %s129, %s130
    %p144 = scmp.eq.s32.totalorder %s18, 1
    %p145 = por %p143, %p144
    %p147 = scmp.ne.s32.totalorder %s130, %s146
    %p148 = scmp.eq.s32.totalorder %s18, 0
    %p149 = por %p147, %p148
    %s150 = ssub.s32 %s12, %s19
    %p151 = scmp.eq.s32.totalorder %s150, 0
    %s153 = sadd.s32 %s152, 1
    %s154 = scalar_select %p151, %s152, %s153
    %p157 = pneg %p151
    %p158 = scmp.eq.s32.totalorder %s12, 1
    %p159 = por %p157, %p158
    %p160 = scmp.ne.s32.totalorder %s152, %s155
    %p161 = scmp.eq.s32.totalorder %s12, 0
    %p162 = por %p160, %p161
    %p163 = scmp.ne.s32.totalorder %s152, %s155
    %p164 = scmp.eq.s32.totalorder %s17, 1
    %p165 = por %p163, %p164
    %p166 = scmp.ne.s32.totalorder %s155, %s156
    %p167 = scmp.eq.s32.totalorder %s17, 0
    %p168 = por %p166, %p167
    %p169 = scmp.ne.s32.totalorder %s155, %s156
    %p170 = scmp.eq.s32.totalorder %s18, 1
    %p171 = por %p169, %p170
    %p173 = scmp.ne.s32.totalorder %s156, %s172
    %p174 = scmp.eq.s32.totalorder %s18, 0
    %p175 = por %p173, %p174
    %p176 = scmp.le.s32.totalorder 1, %s12
    %p177 = scmp.lt.s32.totalorder %s12, 3
    %p178 = pnand %p176, %p177
    %p179 = pneg %p178
    // Predicated region
    $region9: #{bayesian_loss.3} parent=5 // pred_check
      _
    $region10: #{bayesian_loss.3} parent=5 // pred_check_branch
      %181 = sbr.rel (%p178) target = $region12
    $region11: #{bayesian_loss.3} parent=5 // pred_region
      %s182 = ssub.s32 %s12, 1
    $region12: #{bayesian_loss.3} parent=5 // pred_fallthru
      _
    %p183 = scmp.lt.s32.totalorder %s12, 2
    // Predicated region
    $region13: #{bayesian_loss.3} parent=5 // pred_check
      %p184 = pneg %p183
    $region14: #{bayesian_loss.3} parent=5 // pred_check_branch
      %186 = sbr.rel (%p184) target = $region16
    $region15: #{bayesian_loss.3} parent=5 // pred_region
      // Predicated region
      $region17: #{bayesian_loss.3} parent=15 // pred_check
        %p187 = pneg %p32
      $region18: #{bayesian_loss.3} parent=15 // pred_check_branch
        %189 = sbr.rel (%p187) target = $region20
      $region19: #{bayesian_loss.3} parent=15 // pred_region
        %p190 = scmp.lt.s32.totalorder %s12, 1
        %s191 = scalar_select %p190, %s12, 1
        %s192 = smul.addr %s191, 8
        %s193 = scalar_lea.vmem %s0, %s192
      $region20: #{bayesian_loss.3} parent=15 // pred_fallthru
        _
      // Predicated region
      $region21: #{bayesian_loss.3} parent=15 // pred_check
        %p194 = pneg %p58
      $region22: #{bayesian_loss.3} parent=15 // pred_check_branch
        %196 = sbr.rel (%p194) target = $region24
      $region23: #{bayesian_loss.3} parent=15 // pred_region
        %p197 = scmp.lt.s32.totalorder %s12, 1
        %s198 = scalar_select %p197, %s12, 1
        %s199 = smul.addr %s198, 8
        %s200 = scalar_lea.vmem %s1, %s199
      $region24: #{bayesian_loss.3} parent=15 // pred_fallthru
        _
      // Predicated region
      $region25: #{bayesian_loss.3} parent=15 // pred_check
        %p201 = pneg %p84
      $region26: #{bayesian_loss.3} parent=15 // pred_check_branch
        %203 = sbr.rel (%p201) target = $region28
      $region27: #{bayesian_loss.3} parent=15 // pred_region
        %p204 = scmp.lt.s32.totalorder %s12, 1
        %s205 = scalar_select %p204, %s12, 1
        %s206 = smul.addr %s205, 8
        %s207 = scalar_lea.vmem %s2, %s206
      $region28: #{bayesian_loss.3} parent=15 // pred_fallthru
        _
    $region16: #{bayesian_loss.3} parent=5 // pred_fallthru
      _
    %p208 = scmp.le.s32.totalorder 1, %s12
    %p209 = scmp.lt.s32.totalorder %s12, 3
    %p210 = pnand %p208, %p209
    %p211 = pneg %p210
    // Predicated region
    $region29: #{bayesian_loss.3} parent=5 // pred_check
      _
    $region30: #{bayesian_loss.3} parent=5 // pred_check_branch
      %213 = sbr.rel (%p210) target = $region32
    $region31: #{bayesian_loss.3} parent=5 // pred_region
      %s214 = ssub.s32 %s12, 1
      %p215 = scmp.lt.s32.totalorder %s17, 1
      %s216 = scalar_select %p215, %s17, 1
      %s217 = smul.addr %s216, 8
      %s218 = scalar_lea.vmem %s0, %s217
      %p219 = pneg %p38
      %p220 = pneg %p35
      %p221 = scmp.lt.s32.totalorder %s17, 1
      %s222 = scalar_select %p221, %s17, 1
      %s223 = smul.addr %s222, 8
      %s224 = scalar_lea.vmem %s1, %s223
      %p225 = pneg %p64
      %p226 = pneg %p61
      %p227 = scmp.lt.s32.totalorder %s17, 1
      %s228 = scalar_select %p227, %s17, 1
      %s229 = smul.addr %s228, 8
      %s230 = scalar_lea.vmem %s2, %s229
      %p231 = pneg %p90
      %p232 = pneg %p87
      %p233 = pneg %p116
      %p234 = pneg %p113
      %p235 = scmp.lt.s32.totalorder %s17, 1
      %s236 = scalar_select %p235, %s17, 1
      %s237 = scalar_lea.vmem %s3, %s236
      %p238 = pneg %p142
      %p239 = pneg %p139
      %p240 = scmp.lt.s32.totalorder %s17, 1
      %s241 = scalar_select %p240, %s17, 1
      %s242 = scalar_lea.vmem %s4, %s241
      %p243 = pneg %p168
      %p244 = pneg %p165
      %p245 = scmp.lt.s32.totalorder %s17, 1
      %s246 = scalar_select %p245, %s17, 1
      %s247 = scalar_lea.vmem %s5, %s246
      %p248 = scmp.lt.s32.totalorder %s17, 1
      %s249 = scalar_select %p248, %s17, 1
      %s250 = smul.addr %s249, 8
      %s251 = scalar_lea.vmem %s0, %s250
      %p252 = scmp.lt.s32.totalorder %s17, 1
      %s253 = scalar_select %p252, %s17, 1
      %s254 = smul.addr %s253, 8
      %s255 = scalar_lea.vmem %s1, %s254
      %p256 = scmp.lt.s32.totalorder %s17, 1
      %s257 = scalar_select %p256, %s17, 1
      %s258 = smul.addr %s257, 8
      %s259 = scalar_lea.vmem %s2, %s258
      %p260 = scmp.lt.s32.totalorder %s17, 1
      %s261 = scalar_select %p260, %s17, 1
      %s262 = scalar_lea.vmem %s3, %s261
      %p263 = scmp.lt.s32.totalorder %s17, 1
      %s264 = scalar_select %p263, %s17, 1
      %s265 = scalar_lea.vmem %s4, %s264
      %p266 = scmp.lt.s32.totalorder %s17, 1
      %s267 = scalar_select %p266, %s17, 1
      %s268 = scalar_lea.vmem %s5, %s267
      %v269 = vld [vmem:[%s251] sm:$0xff]
      %v270 = vld [vmem:[%s255] sm:$0xff]
      %v271 = vld [vmem:[%s259] sm:$0xff]
      %v272 = vsub.f32 %v269, %v270
      %v273 = vmul.f32 %v272, %v272
      %v274 = vrot.slane %v273, 4
      %v275 = vadd.f32 %v273, %v274
      %v276 = vrot.slane %v275, 2
      %v277 = vadd.f32 %v275, %v276
      %v278 = vrot.slane %v277, 1
      %v279 = vadd.f32 %v277, %v278
      %280 = vst [vmem:[%s262] sm:$0x1] %v279
      %v281 = vand.u32 2147483647, %v272
      %v282 = vrot.slane %v281, 4
      %v283 = vadd.f32 %v281, %v282
      %v284 = vrot.slane %v283, 2
      %v285 = vadd.f32 %v283, %v284
      %v286 = vrot.slane %v285, 1
      %v287 = vadd.f32 %v285, %v286
      %288 = vst [vmem:[%s265] sm:$0x1] %v287
      %v289 = vrot.slane %v271, 4
      %v290 = vadd.f32 %v271, %v289
      %v291 = vrot.slane %v290, 2
      %v292 = vadd.f32 %v290, %v291
      %v293 = vrot.slane %v292, 1
      %v294 = vadd.f32 %v292, %v293
      %295 = vst [vmem:[%s268] sm:$0x1] %v294
      %p296 = scmp.lt.s32.totalorder %s17, 1
      %s297 = scalar_select %p296, %s17, 1
      %s298 = scalar_lea.vmem %s3, %s297
      %p299 = scmp.lt.s32.totalorder %s17, 1
      %s300 = scalar_select %p299, %s17, 1
      %s301 = scalar_lea.vmem %s4, %s300
      %p302 = scmp.lt.s32.totalorder %s17, 1
      %s303 = scalar_select %p302, %s17, 1
      %s304 = scalar_lea.vmem %s5, %s303
      // Predicated region
      $region33: #{bayesian_loss.3} parent=31 // pred_check
        %p305 = pneg %p113
      $region34: #{bayesian_loss.3} parent=31 // pred_check_branch
        %307 = sbr.rel (%p305) target = $region36
      $region35: #{bayesian_loss.3} parent=31 // pred_region
        _
      $region36: #{bayesian_loss.3} parent=31 // pred_fallthru
        _
      // Predicated region
      $region37: #{bayesian_loss.3} parent=31 // pred_check
        %p308 = pneg %p139
      $region38: #{bayesian_loss.3} parent=31 // pred_check_branch
        %310 = sbr.rel (%p308) target = $region40
      $region39: #{bayesian_loss.3} parent=31 // pred_region
        _
      $region40: #{bayesian_loss.3} parent=31 // pred_fallthru
        _
      // Predicated region
      $region41: #{bayesian_loss.3} parent=31 // pred_check
        %p311 = pneg %p165
      $region42: #{bayesian_loss.3} parent=31 // pred_check_branch
        %313 = sbr.rel (%p311) target = $region44
      $region43: #{bayesian_loss.3} parent=31 // pred_region
        _
      $region44: #{bayesian_loss.3} parent=31 // pred_fallthru
        _
    $region32: #{bayesian_loss.3} parent=5 // pred_fallthru
      _
    %p314 = scmp.le.s32.totalorder 2, %s12
    // Predicated region
    $region45: #{bayesian_loss.3} parent=5 // pred_check
      %p315 = pneg %p314
    $region46: #{bayesian_loss.3} parent=5 // pred_check_branch
      %317 = sbr.rel (%p315) target = $region48
    $region47: #{bayesian_loss.3} parent=5 // pred_region
      %s318 = ssub.s32 %s12, 2
      // Predicated region
      $region49: #{bayesian_loss.3} parent=47 // pred_check
        %p319 = pneg %p119
      $region50: #{bayesian_loss.3} parent=47 // pred_check_branch
        %321 = sbr.rel (%p319) target = $region52
      $region51: #{bayesian_loss.3} parent=47 // pred_region
        %p322 = scmp.lt.s32.totalorder %s18, 1
        %s323 = scalar_select %p322, %s18, 1
        %s324 = scalar_lea.vmem %s3, %s323
      $region52: #{bayesian_loss.3} parent=47 // pred_fallthru
        _
      // Predicated region
      $region53: #{bayesian_loss.3} parent=47 // pred_check
        %p325 = pneg %p145
      $region54: #{bayesian_loss.3} parent=47 // pred_check_branch
        %327 = sbr.rel (%p325) target = $region56
      $region55: #{bayesian_loss.3} parent=47 // pred_region
        %p328 = scmp.lt.s32.totalorder %s18, 1
        %s329 = scalar_select %p328, %s18, 1
        %s330 = scalar_lea.vmem %s4, %s329
      $region56: #{bayesian_loss.3} parent=47 // pred_fallthru
        _
      // Predicated region
      $region57: #{bayesian_loss.3} parent=47 // pred_check
        %p331 = pneg %p171
      $region58: #{bayesian_loss.3} parent=47 // pred_check_branch
        %333 = sbr.rel (%p331) target = $region60
      $region59: #{bayesian_loss.3} parent=47 // pred_region
        %p334 = scmp.lt.s32.totalorder %s18, 1
        %s335 = scalar_select %p334, %s18, 1
        %s336 = scalar_lea.vmem %s5, %s335
      $region60: #{bayesian_loss.3} parent=47 // pred_fallthru
        _
    $region48: #{bayesian_loss.3} parent=5 // pred_fallthru
      _
  $region6: #{bayesian_loss.3} parent=0 // loop_footer
    %s16 = sadd.s32 1, %s12
  $region7: #{bayesian_loss.3} parent=0 // loop_footer_branch
    %11 = sbr.rel target = $region3
  $region8: #{bayesian_loss.3} parent=0 // loop_exit
    _

// kernel: bayesian_loss.5
$region0: #{bayesian_loss.5}
  #allocation0 [shape = 'u32[]', space=smem, size = 0x4, offset = 0x4, fixed_abs, tag = 'smem constant byte address 0x4 - core index']
  #allocation1 [shape = 'u32[144,128]{1,0:T(1,128)}', space=vmem, size = 0x12000, scoped, tag = 'internal scratch']
  %s0 = inlined_call_operand.vmem [shape: f32[8,128], index: 0, kind: input, shape index: {}]
  %s1 = inlined_call_operand.vmem [shape: f32[8,128], index: 1, kind: input, shape index: {}]
  %s2 = inlined_call_operand.vmem [shape: f32[1,1,128], index: 2, kind: output, shape index: {}]
  %s3 = sld [smem:[#allocation0]]
  $region18: #{bayesian_loss.5} parent=0
    _
  %s5 = ssub.s32 1, %s3
  %s6 = scalar_select 0, %s5, %s3
  // Predicated region
  $region2: #{bayesian_loss.5} parent=0 // pred_check
    _
  $region3: #{bayesian_loss.5} parent=0 // pred_check_branch
    %8 = sbr.rel (0) target = $region5
  $region4: #{bayesian_loss.5} parent=0 // pred_region
    _
  $region5: #{bayesian_loss.5} parent=0 // pred_fallthru
    _
  // Predicated region
  $region6: #{bayesian_loss.5} parent=0 // pred_check
    _
  $region7: #{bayesian_loss.5} parent=0 // pred_check_branch
    %10 = sbr.rel (0) target = $region9
  $region8: #{bayesian_loss.5} parent=0 // pred_region
    _
  $region9: #{bayesian_loss.5} parent=0 // pred_fallthru
    _
  %v11 = vld [vmem:[%s0] sm:$0xff]
  %v12 = vld [vmem:[%s1] sm:$0xff]
  %v13 = vmax.f32 %v12, 0.0
  %v14 = vand.u32 2147483647, %v12
  %v15 = vsub.f32 0.0, %v14
  %v16 = vmul.f32 %v15, 1.442695
  %v17 = vpow.pop %v16
  %v18 = vadd.f32 %v17, 1.0
  %v19 = vlog2.pop %v18
  %v20 = vmul.f32 %v19, 0.6931472
  %v21 = vmul.f32 -0.5, %v17
  %v22 = vadd.f32 %v21, 1.0
  %v23 = vmul.f32 %v22, %v17
  %v24 = vand.u32 2147483647, %v17
  %vm25 = vcmp.lt.f32.partialorder %v24, 0.0004427343
  %v26 = vsel %vm25, %v23, %v20
  %v27 = vadd.f32 %v13, %v26
  %vm28 = vcmp.lt.f32.partialorder %v12, -20.0
  %v29 = vlog2.pop %v27
  %v30 = vmul.f32 %v29, 0.6931472
  %v31 = vsel %vm28, %v12, %v30
  %v32 = vmul.f32 %v27, %v27
  %v33 = vmul.f32 %v11, %v11
  %v34 = vadd.f32 %v32, %v33
  %v35 = vmul.f32 %v34, 0.5
  %v36 = vsub.f32 %v35, %v31
  %v37 = vsub.f32 %v36, 0.5
  %v38 = vrot.slane %v37, 4
  %v39 = vadd.f32 %v37, %v38
  %v40 = vrot.slane %v39, 2
  %v41 = vadd.f32 %v39, %v40
  %v42 = vrot.slane %v41, 1
  %v43 = vadd.f32 %v41, %v42
  %44 = vst [vmem:[%s2] sm:$0x1] %v43
  // Predicated region
  $region10: #{bayesian_loss.5} parent=0 // pred_check
    _
  $region11: #{bayesian_loss.5} parent=0 // pred_check_branch
    %46 = sbr.rel (0) target = $region13
  $region12: #{bayesian_loss.5} parent=0 // pred_region
    _
  $region13: #{bayesian_loss.5} parent=0 // pred_fallthru
    _
  // Predicated region
  $region14: #{bayesian_loss.5} parent=0 // pred_check
    _
  $region15: #{bayesian_loss.5} parent=0 // pred_check_branch
    %48 = sbr.rel (0) target = $region17
  $region16: #{bayesian_loss.5} parent=0 // pred_region
    _
  $region17: #{bayesian_loss.5} parent=0 // pred_fallthru
    _

// kernel: bayesian_loss.4
$region0: #{bayesian_loss.4}
  #allocation0 [shape = 'u32[]', space=smem, size = 0x4, offset = 0x4, fixed_abs, tag = 'smem constant byte address 0x4 - core index']
  #allocation1 [shape = 'u32[144,128]{1,0:T(1,128)}', space=vmem, size = 0x12000, scoped, tag = 'internal scratch']
  %s0 = inlined_call_operand.vmem [shape: f32[2], index: 0, kind: input, shape index: {}]
  %s1 = inlined_call_operand.vmem [shape: f32[16,128], index: 1, kind: input, shape index: {}]
  %s2 = inlined_call_operand.vmem [shape: f32[16,128], index: 2, kind: input, shape index: {}]
  %s3 = inlined_call_operand.vmem [shape: f32[16,128], index: 3, kind: input, shape index: {}]
  %s4 = inlined_call_operand.vmem [shape: f32[2,1,128], index: 4, kind: output, shape index: {}]
  %s5 = sld [smem:[#allocation0]]
  $region53: #{bayesian_loss.4} parent=0
    _
  %s7 = ssub.s32 1, %s5
  %s8 = scalar_select 0, %s7, %s5
  $region1: #{bayesian_loss.4} parent=0
    #allocation2 [shape = 'u8[512]{0}', space=smem, size = 0x200, scoped, tag = 'input window, operand 0, single buffered']
    #allocation3 [shape = 's32[2]{0}', space=sflag, size = 0x8, scoped, tag = 'scoped memory for bayesian_loss.4']
    %9 = vsyncpa [#allocation3], 0
    loop: start=0, step=1, limit=4
    $region2: #{bayesian_loss.4} parent=1 // loop_pre_header
      _
    $region3: #{bayesian_loss.4} parent=1 // loop_header
      %s11 = sphi 0, %s15
      %p12 = scmp.ge.s32.totalorder %s11, 4
      %s19 = sphi 0, %s19
      %s21 = sphi 0, %s19
      %s22 = sphi 0, %s21
      %s36 = sphi 0, %s22
      %s42 = sphi 0, %s44
      %s45 = sphi 0, %s42
      %s46 = sphi 0, %s45
      %s62 = sphi 0, %s46
      %s68 = sphi 0, %s70
      %s71 = sphi 0, %s68
      %s72 = sphi 0, %s71
      %s88 = sphi 0, %s72
      %s94 = sphi 0, %s96
      %s97 = sphi 0, %s94
      %s98 = sphi 0, %s97
      %s114 = sphi 0, %s98
      %s120 = sphi 0, %s122
      %s123 = sphi 0, %s120
      %s124 = sphi 0, %s123
      %s140 = sphi 0, %s124
    $region4: #{bayesian_loss.4} parent=1 // loop_header_branch
      %14 = sbr.rel (%p12) target = $region8
    $region5: #{bayesian_loss.4} parent=1 // loop_body
      %s16 = ssub.s32 %s11, 1
      %s17 = ssub.s32 %s11, 2
      %s18 = sadd.s32 %s11, 1
      %s20 = sadd.s32 %s19, 1
      %p23 = scmp.eq.s32.totalorder %s11, 1
      %p24 = scmp.ne.s32.totalorder %s19, %s21
      %p25 = scmp.eq.s32.totalorder %s11, 0
      %p26 = por %p24, %p25
      %p27 = scmp.ne.s32.totalorder %s19, %s21
      %p28 = scmp.eq.s32.totalorder %s16, 1
      %p29 = por %p27, %p28
      %p30 = scmp.ne.s32.totalorder %s21, %s22
      %p31 = scmp.eq.s32.totalorder %s16, 0
      %p32 = por %p30, %p31
      %p33 = scmp.ne.s32.totalorder %s21, %s22
      %p34 = scmp.eq.s32.totalorder %s17, 1
      %p35 = por %p33, %p34
      %p37 = scmp.ne.s32.totalorder %s22, %s36
      %p38 = scmp.eq.s32.totalorder %s17, 0
      %p39 = por %p37, %p38
      %s40 = ssub.s32 %s11, %s18
      %p41 = scmp.eq.s32.totalorder %s40, 0
      %s43 = sadd.s32 %s42, 1
      %s44 = scalar_select %p41, %s42, %s43
      %p47 = pneg %p41
      %p48 = scmp.eq.s32.totalorder %s11, 1
      %p49 = por %p47, %p48
      %p50 = scmp.ne.s32.totalorder %s42, %s45
      %p51 = scmp.eq.s32.totalorder %s11, 0
      %p52 = por %p50, %p51
      %p53 = scmp.ne.s32.totalorder %s42, %s45
      %p54 = scmp.eq.s32.totalorder %s16, 1
      %p55 = por %p53, %p54
      %p56 = scmp.ne.s32.totalorder %s45, %s46
      %p57 = scmp.eq.s32.totalorder %s16, 0
      %p58 = por %p56, %p57
      %p59 = scmp.ne.s32.totalorder %s45, %s46
      %p60 = scmp.eq.s32.totalorder %s17, 1
      %p61 = por %p59, %p60
      %p63 = scmp.ne.s32.totalorder %s46, %s62
      %p64 = scmp.eq.s32.totalorder %s17, 0
      %p65 = por %p63, %p64
      %s66 = ssub.s32 %s11, %s18
      %p67 = scmp.eq.s32.totalorder %s66, 0
      %s69 = sadd.s32 %s68, 1
      %s70 = scalar_select %p67, %s68, %s69
      %p73 = pneg %p67
      %p74 = scmp.eq.s32.totalorder %s11, 1
      %p75 = por %p73, %p74
      %p76 = scmp.ne.s32.totalorder %s68, %s71
      %p77 = scmp.eq.s32.totalorder %s11, 0
      %p78 = por %p76, %p77
      %p79 = scmp.ne.s32.totalorder %s68, %s71
      %p80 = scmp.eq.s32.totalorder %s16, 1
      %p81 = por %p79, %p80
      %p82 = scmp.ne.s32.totalorder %s71, %s72
      %p83 = scmp.eq.s32.totalorder %s16, 0
      %p84 = por %p82, %p83
      %p85 = scmp.ne.s32.totalorder %s71, %s72
      %p86 = scmp.eq.s32.totalorder %s17, 1
      %p87 = por %p85, %p86
      %p89 = scmp.ne.s32.totalorder %s72, %s88
      %p90 = scmp.eq.s32.totalorder %s17, 0
      %p91 = por %p89, %p90
      %s92 = ssub.s32 %s11, %s18
      %p93 = scmp.eq.s32.totalorder %s92, 0
      %s95 = sadd.s32 %s94, 1
      %s96 = scalar_select %p93, %s94, %s95
      %p99 = pneg %p93
      %p100 = scmp.eq.s32.totalorder %s11, 1
      %p101 = por %p99, %p100
      %p102 = scmp.ne.s32.totalorder %s94, %s97
      %p103 = scmp.eq.s32.totalorder %s11, 0
      %p104 = por %p102, %p103
      %p105 = scmp.ne.s32.totalorder %s94, %s97
      %p106 = scmp.eq.s32.totalorder %s16, 1
      %p107 = por %p105, %p106
      %p108 = scmp.ne.s32.totalorder %s97, %s98
      %p109 = scmp.eq.s32.totalorder %s16, 0
      %p110 = por %p108, %p109
      %p111 = scmp.ne.s32.totalorder %s97, %s98
      %p112 = scmp.eq.s32.totalorder %s17, 1
      %p113 = por %p111, %p112
      %p115 = scmp.ne.s32.totalorder %s98, %s114
      %p116 = scmp.eq.s32.totalorder %s17, 0
      %p117 = por %p115, %p116
      %s118 = ssub.s32 %s11, %s18
      %p119 = scmp.eq.s32.totalorder %s118, 0
      %s121 = sadd.s32 %s120, 1
      %s122 = scalar_select %p119, %s120, %s121
      %p125 = pneg %p119
      %p126 = scmp.eq.s32.totalorder %s11, 1
      %p127 = por %p125, %p126
      %p128 = scmp.ne.s32.totalorder %s120, %s123
      %p129 = scmp.eq.s32.totalorder %s11, 0
      %p130 = por %p128, %p129
      %p131 = scmp.ne.s32.totalorder %s120, %s123
      %p132 = scmp.eq.s32.totalorder %s16, 1
      %p133 = por %p131, %p132
      %p134 = scmp.ne.s32.totalorder %s123, %s124
      %p135 = scmp.eq.s32.totalorder %s16, 0
      %p136 = por %p134, %p135
      %p137 = scmp.ne.s32.totalorder %s123, %s124
      %p138 = scmp.eq.s32.totalorder %s17, 1
      %p139 = por %p137, %p138
      %p141 = scmp.ne.s32.totalorder %s124, %s140
      %p142 = scmp.eq.s32.totalorder %s17, 0
      %p143 = por %p141, %p142
      %p144 = scmp.le.s32.totalorder 1, %s11
      %p145 = scmp.lt.s32.totalorder %s11, 3
      %p146 = pnand %p144, %p145
      %p147 = pneg %p146
      // Predicated region
      $region9: #{bayesian_loss.4} parent=5 // pred_check
        _
      $region10: #{bayesian_loss.4} parent=5 // pred_check_branch
        %149 = sbr.rel (%p146) target = $region12
      $region11: #{bayesian_loss.4} parent=5 // pred_region
        %s150 = ssub.s32 %s11, 1
        // Predicated region
        $region13: #{bayesian_loss.4} parent=11 // pred_check
          %p151 = pneg %p32
        $region14: #{bayesian_loss.4} parent=11 // pred_check_branch
          %153 = sbr.rel (%p151) target = $region16
        $region15: #{bayesian_loss.4} parent=11 // pred_region
          %s155 = ssub.s32 16, 16
          %156 = vsyncadd [#allocation3], %s155
          %s158 = sshll.u32 %s0, 4
          %s159 = int_to_ptr.vmem [resolvable:$true] %s158
          %161 = dma.vmem_to_smem %s159, 16, [#allocation2], [#allocation3]
        $region16: #{bayesian_loss.4} parent=11 // pred_fallthru
          _
      $region12: #{bayesian_loss.4} parent=5 // pred_fallthru
        _
      %p162 = scmp.lt.s32.totalorder %s11, 2
      // Predicated region
      $region17: #{bayesian_loss.4} parent=5 // pred_check
        %p163 = pneg %p162
      $region18: #{bayesian_loss.4} parent=5 // pred_check_branch
        %165 = sbr.rel (%p163) target = $region20
      $region19: #{bayesian_loss.4} parent=5 // pred_region
        // Predicated region
        $region21: #{bayesian_loss.4} parent=19 // pred_check
          %p166 = pneg %p52
        $region22: #{bayesian_loss.4} parent=19 // pred_check_branch
          %168 = sbr.rel (%p166) target = $region24
        $region23: #{bayesian_loss.4} parent=19 // pred_region
          %p169 = scmp.lt.s32.totalorder %s11, 1
          %s170 = scalar_select %p169, %s11, 1
          %s171 = smul.addr %s170, 8
          %s172 = scalar_lea.vmem %s1, %s171
        $region24: #{bayesian_loss.4} parent=19 // pred_fallthru
          _
        // Predicated region
        $region25: #{bayesian_loss.4} parent=19 // pred_check
          %p173 = pneg %p78
        $region26: #{bayesian_loss.4} parent=19 // pred_check_branch
          %175 = sbr.rel (%p173) target = $region28
        $region27: #{bayesian_loss.4} parent=19 // pred_region
          %p176 = scmp.lt.s32.totalorder %s11, 1
          %s177 = scalar_select %p176, %s11, 1
          %s178 = smul.addr %s177, 8
          %s179 = scalar_lea.vmem %s2, %s178
        $region28: #{bayesian_loss.4} parent=19 // pred_fallthru
          _
        // Predicated region
        $region29: #{bayesian_loss.4} parent=19 // pred_check
          %p180 = pneg %p104
        $region30: #{bayesian_loss.4} parent=19 // pred_check_branch
          %182 = sbr.rel (%p180) target = $region32
        $region31: #{bayesian_loss.4} parent=19 // pred_region
          %p183 = scmp.lt.s32.totalorder %s11, 1
          %s184 = scalar_select %p183, %s11, 1
          %s185 = smul.addr %s184, 8
          %s186 = scalar_lea.vmem %s3, %s185
        $region32: #{bayesian_loss.4} parent=19 // pred_fallthru
          _
      $region20: #{bayesian_loss.4} parent=5 // pred_fallthru
        _
      %p187 = scmp.le.s32.totalorder 1, %s11
      %p188 = scmp.lt.s32.totalorder %s11, 3
      %p189 = pnand %p187, %p188
      %p190 = pneg %p189
      // Predicated region
      $region33: #{bayesian_loss.4} parent=5 // pred_check
        _
      $region34: #{bayesian_loss.4} parent=5 // pred_check_branch
        %192 = sbr.rel (%p189) target = $region36
      $region35: #{bayesian_loss.4} parent=5 // pred_region
        %s193 = ssub.s32 %s11, 1
        // Predicated region
        $region37: #{bayesian_loss.4} parent=35 // pred_check
          %p194 = pneg %p32
        $region38: #{bayesian_loss.4} parent=35 // pred_check_branch
          %196 = sbr.rel (%p194) target = $region40
        $region39: #{bayesian_loss.4} parent=35 // pred_region
          %197 = dma.done [#allocation3], 16
        $region40: #{bayesian_loss.4} parent=35 // pred_fallthru
          _
        %198 = sfence
        %p199 = pneg %p32
        %p200 = pneg %p29
        %p201 = scmp.lt.s32.totalorder %s16, 1
        %s202 = scalar_select %p201, %s16, 1
        %s203 = smul.addr %s202, 8
        %s204 = scalar_lea.vmem %s1, %s203
        %p205 = pneg %p58
        %p206 = pneg %p55
        %p207 = scmp.lt.s32.totalorder %s16, 1
        %s208 = scalar_select %p207, %s16, 1
        %s209 = smul.addr %s208, 8
        %s210 = scalar_lea.vmem %s2, %s209
        %p211 = pneg %p84
        %p212 = pneg %p81
        %p213 = scmp.lt.s32.totalorder %s16, 1
        %s214 = scalar_select %p213, %s16, 1
        %s215 = smul.addr %s214, 8
        %s216 = scalar_lea.vmem %s3, %s215
        %p217 = pneg %p110
        %p218 = pneg %p107
        %p219 = pneg %p136
        %p220 = pneg %p133
        %p221 = scmp.lt.s32.totalorder %s16, 1
        %s222 = scalar_select %p221, %s16, 1
        %s223 = scalar_lea.vmem %s4, %s222
        %p224 = scmp.lt.s32.totalorder %s16, 1
        %s225 = scalar_select %p224, %s16, 1
        %s226 = smul.addr %s225, 8
        %s227 = scalar_lea.vmem %s1, %s226
        %p228 = scmp.lt.s32.totalorder %s16, 1
        %s229 = scalar_select %p228, %s16, 1
        %s230 = smul.addr %s229, 8
        %s231 = scalar_lea.vmem %s2, %s230
        %p232 = scmp.lt.s32.totalorder %s16, 1
        %s233 = scalar_select %p232, %s16, 1
        %s234 = smul.addr %s233, 8
        %s235 = scalar_lea.vmem %s3, %s234
        %p236 = scmp.lt.s32.totalorder %s16, 1
        %s237 = scalar_select %p236, %s16, 1
        %s238 = scalar_lea.vmem %s4, %s237
        %s239 = sld [smem:[#allocation2]]
        %s240 = sld [smem:[#allocation2 + $0x1]]
        %v241 = vld [vmem:[%s227] sm:$0xff]
        %v242 = vld [vmem:[%s231] sm:$0xff]
        %v243 = vld [vmem:[%s235] sm:$0xff]
        %v244 = vsub.f32 %v241, %v242
        %v245 = vand.u32 2147483647, %v244
        %v246 = vstv %s239
        %v247 = vmul.f32 %v245, %v246
        %v248 = vstv %s240
        %v249 = vmul.f32 %v243, %v248
        %v250 = vsub.f32 %v247, %v249
        %v251 = vand.u32 2147483647, %v250
        %v252 = vrot.slane %v251, 4
        %v253 = vadd.f32 %v251, %v252
        %v254 = vrot.slane %v253, 2
        %v255 = vadd.f32 %v253, %v254
        %v256 = vrot.slane %v255, 1
        %v257 = vadd.f32 %v255, %v256
        %258 = vst [vmem:[%s238] sm:$0x1] %v257
        %p259 = scmp.lt.s32.totalorder %s16, 1
        %s260 = scalar_select %p259, %s16, 1
        %s261 = scalar_lea.vmem %s4, %s260
        // Predicated region
        $region41: #{bayesian_loss.4} parent=35 // pred_check
          %p262 = pneg %p133
        $region42: #{bayesian_loss.4} parent=35 // pred_check_branch
          %264 = sbr.rel (%p262) target = $region44
        $region43: #{bayesian_loss.4} parent=35 // pred_region
          _
        $region44: #{bayesian_loss.4} parent=35 // pred_fallthru
          _
      $region36: #{bayesian_loss.4} parent=5 // pred_fallthru
        _
      %p265 = scmp.le.s32.totalorder 2, %s11
      // Predicated region
      $region45: #{bayesian_loss.4} parent=5 // pred_check
        %p266 = pneg %p265
      $region46: #{bayesian_loss.4} parent=5 // pred_check_branch
        %268 = sbr.rel (%p266) target = $region48
      $region47: #{bayesian_loss.4} parent=5 // pred_region
        %s269 = ssub.s32 %s11, 2
        // Predicated region
        $region49: #{bayesian_loss.4} parent=47 // pred_check
          %p270 = pneg %p139
        $region50: #{bayesian_loss.4} parent=47 // pred_check_branch
          %272 = sbr.rel (%p270) target = $region52
        $region51: #{bayesian_loss.4} parent=47 // pred_region
          %p273 = scmp.lt.s32.totalorder %s17, 1
          %s274 = scalar_select %p273, %s17, 1
          %s275 = scalar_lea.vmem %s4, %s274
        $region52: #{bayesian_loss.4} parent=47 // pred_fallthru
          _
      $region48: #{bayesian_loss.4} parent=5 // pred_fallthru
        _
    $region6: #{bayesian_loss.4} parent=1 // loop_footer
      %s15 = sadd.s32 1, %s11
    $region7: #{bayesian_loss.4} parent=1 // loop_footer_branch
      %10 = sbr.rel target = $region3
    $region8: #{bayesian_loss.4} parent=1 // loop_exit
      _
    %276 = vsyncpa [#allocation3], 1
    %s277 = scalar_lea.sflag [#allocation3], 1
    %278 = vsyncpa %s277, 1

</llo_original>
